<compile_context>
chip_gen: v7x
topology: tpu7x:2x2x1
jax: 0.10.0
libtpu: 0.0.40
codegen_flags: <defaults>
</compile_context>

<pallas_src>
import math
import functools

import numpy as np
import jax
import jax.numpy as jnp
from jax.experimental import pallas as pl
from jax.experimental.pallas import tpu as pltpu

_LANES = 128
_SUBLANES = 8
# Double-buffered pipeline-buffer budget used to cap the tile size (safe under the
# v7x 64 MiB physical VMEM; v5e/v6e have 128 MiB).
_VMEM_TILE_BUDGET = 40 << 20


# ----------------------------------------------------------------------------
# In-kernel helpers
# ----------------------------------------------------------------------------
def _atan_poly(x):
    """float32 arctan via odd minimax polynomial (error ~ a few f32 ulp).

    abs / mul / add / select only (VPU), with the 1/|x| range reduction routed to
    the EUP via an approximate reciprocal."""
    ax = jnp.abs(x)
    big = ax > 1.0
    s = jnp.where(big, pl.reciprocal(ax, approx=True), ax)   # range-reduce to [0,1]
    t = s * s
    u = jnp.float32(0.00282363896258175373)
    u = u * t + jnp.float32(-0.0159569028764963150)
    u = u * t + jnp.float32(0.0425049886107444763)
    u = u * t + jnp.float32(-0.0748900920152664184)
    u = u * t + jnp.float32(0.106347933411598205)
    u = u * t + jnp.float32(-0.142027363181114196)
    u = u * t + jnp.float32(0.199926957488059997)
    u = u * t + jnp.float32(-0.333331018686294555)
    r = s + s * t * u
    r = jnp.where(big, jnp.float32(math.pi / 2) - r, r)
    return jnp.where(x < 0, -r, r)


# ----------------------------------------------------------------------------
# Pallas kernel: per-pixel hot path + per-(batch, tile) partial reductions
# ----------------------------------------------------------------------------
def _fbod_loss_kernel(conf_ref, loc_ref, labcls_ref, labloc_ref,
                      neg_mse_ref, stats_ref,
                      *, feat_w, inv_feat_w, sx, sy, scale, num_classes,
                      tile_rows, hw_valid):
    t = pl.program_id(1)
    TR = tile_rows
    f32 = jnp.float32

    # ---- flat element index (exact int) + ragged-tail validity mask ------------
    r_iota = jax.lax.broadcasted_iota(jnp.int32, (TR, _LANES), 0)
    l_iota = jax.lax.broadcasted_iota(jnp.int32, (TR, _LANES), 1)
    flat_i = t * (TR * _LANES) + r_iota * _LANES + l_iota
    valid = flat_i < hw_valid

    # ---- (row, col) recovery: fp quotient estimate + one exact correction ------
    # flat < 2**24 is exact in f32 and flat - row*W is computed exactly, so the
    # correction removes any +-1 quotient error from the multiply-by-reciprocal.
    flat = flat_i.astype(f32)
    row = jnp.floor((flat + 0.5) * inv_feat_w)
    col = flat - row * feat_w
    fix_lo = col < 0.0
    row = jnp.where(fix_lo, row - 1.0, row)
    col = jnp.where(fix_lo, col + feat_w, col)
    fix_hi = col >= feat_w
    row = jnp.where(fix_hi, row + 1.0, row)
    col = jnp.where(fix_hi, col - feat_w, col)
    ref_x = col * sx + (sx * 0.5)
    ref_y = row * sy + (sy * 0.5)

    # ---- confidence / label branch first; store neg_mse ASAP -------------------
    pred_conf = jax.nn.sigmoid(conf_ref[0].astype(f32))              # (TR, 128)

    labcls = labcls_ref[0].astype(f32)                               # (C, TR, 128)
    cls_ceil = jnp.ceil(labcls)
    if num_classes > 2:
        label_conf = jnp.sum(labcls[1:], axis=0)
        weight_pos = (1.0 - cls_ceil[0]) * jnp.sum(cls_ceil, axis=0)
    else:
        label_conf = labcls[1]
        weight_pos = cls_ceil[1]
    weight_neg = jnp.where(valid, cls_ceil[0], 0.0)
    weight_pos = jnp.where(valid, weight_pos, 0.0)

    labloc = labloc_ref[0].astype(f32)                               # (5, TR, 128)
    cx2 = labloc[0]
    cy2 = labloc[1]
    w2 = labloc[2]
    h2 = labloc[3]
    pw = jnp.where(valid, labloc[4], 0.0) * weight_pos   # sample_weight * weight_pos

    mse = jnp.where(valid, (label_conf - pred_conf) ** 2, 0.0)
    # store the hard-negative MSE plane immediately (shortens live ranges before
    # the CIoU block; padded / ragged cells are exactly 0).
    neg_mse_ref[0] = (mse * weight_neg).astype(neg_mse_ref.dtype)

    # per-tile partial sums, reduced over the sublane axis only (the cheap 128-lane
    # final reduce happens in glue JAX).
    sum_neg_w = jnp.sum(weight_neg, axis=0, keepdims=True)           # (1, 128)
    sum_pos_w = jnp.sum(weight_pos, axis=0, keepdims=True)
    sum_pos_mse = jnp.sum(mse * pw, axis=0, keepdims=True)

    # ---- CIoU -------------------------------------------------------------------
    def _rcp(x):  # torch.clamp(x, min=1e-6) then divide, via the EUP approx rcp
        return pl.reciprocal(jnp.maximum(x, 1e-6), approx=True)

    # decode the predicted box; the (cx -/+ w/2) corners cancel back to x1/x2/y1/y2
    # so they are reused directly (no recompute); cx1/cy1 only feed center_d.
    x1 = loc_ref[0, 0].astype(f32) * scale + ref_x
    y1 = loc_ref[0, 1].astype(f32) * scale + ref_y
    x2 = loc_ref[0, 2].astype(f32) * scale + ref_x
    y2 = loc_ref[0, 3].astype(f32) * scale + ref_y
    w1 = x2 - x1
    h1 = y2 - y1
    cx1 = x1 + w1 * 0.5
    cy1 = y1 + h1 * 0.5

    b2_min_x = cx2 - w2 * 0.5
    b2_max_x = cx2 + w2 * 0.5
    b2_min_y = cy2 - h2 * 0.5
    b2_max_y = cy2 + h2 * 0.5

    iw = jnp.maximum(jnp.minimum(x2, b2_max_x) - jnp.maximum(x1, b2_min_x), 0.0)
    ih = jnp.maximum(jnp.minimum(y2, b2_max_y) - jnp.maximum(y1, b2_min_y), 0.0)
    inter = iw * ih
    union = w1 * h1 + w2 * h2 - inter
    iou = inter * _rcp(union)

    center_d = (cx1 - cx2) ** 2 + (cy1 - cy2) ** 2
    ew = jnp.maximum(jnp.maximum(x2, b2_max_x) - jnp.minimum(x1, b2_min_x), 0.0)
    eh = jnp.maximum(jnp.maximum(y2, b2_max_y) - jnp.minimum(y1, b2_min_y), 0.0)
    ediag = ew * ew + eh * eh
    ciou = iou - center_d * _rcp(ediag)

    v = (4.0 / math.pi ** 2) * (_atan_poly(w1 * _rcp(h1)) -
                                _atan_poly(w2 * _rcp(h2))) ** 2
    alpha = v * _rcp(1.0 - iou + v)
    ciou = ciou - alpha * v

    sum_ciou = jnp.sum(jnp.where(valid, (1.0 - ciou) * pw, 0.0),
                       axis=0, keepdims=True)

    # ---- pack the four per-tile partial sums into rows 0..3 of this stats block -
    row_id = jax.lax.broadcasted_iota(jnp.int32, (_SUBLANES, _LANES), 0)
    stats_ref[0] = (jnp.where(row_id == 0, sum_neg_w, 0.0) +
                    jnp.where(row_id == 1, sum_pos_w, 0.0) +
                    jnp.where(row_id == 2, sum_pos_mse, 0.0) +
                    jnp.where(row_id == 3, sum_ciou, 0.0))


# ----------------------------------------------------------------------------
# Wrapper
# ----------------------------------------------------------------------------
def _geometry(hw, max_tile_rows, bytes_per_row):
    rows = -(-hw // _LANES)                          # ceil(HW / 128)
    # tile cap from the double-buffered VMEM budget, 8-sublane aligned
    cap = _VMEM_TILE_BUDGET // (2 * bytes_per_row)
    cap = max(_SUBLANES, (cap // _SUBLANES) * _SUBLANES)
    cap = min(int(max_tile_rows), cap)
    if rows <= cap:
        # one tile per batch: block == full extent (no 8-alignment requirement)
        return rows, rows, 1
    tile_rows = max(_SUBLANES, (cap // _SUBLANES) * _SUBLANES)
    num_tiles = -(-rows // tile_rows)                # last tile may be ragged
    return rows, tile_rows, num_tiles


@functools.partial(jax.jit, static_argnames=("model_input_size", "scale",
                                             "num_classes", "max_neg_topk",
                                             "max_tile_rows", "neg_mse_dtype"))
def fbod_loss(conf_logits, loc_pred, label_cls_cf, label_loc_sw_cf,
              model_input_size=(672, 384), scale=80.0, num_classes=2,
              max_neg_topk=512, max_tile_rows=1024, neg_mse_dtype=jnp.float32):
    """FBOD loss forward.

    conf_logits     : (bs, 1, H, W)
    loc_pred        : (bs, 4, H, W)
    label_cls_cf    : (bs, num_classes, H, W)   channel-first labels
    label_loc_sw_cf : (bs, 5, H, W)             [cx, cy, w, h, sample_weight]
    Inputs may be f32 or bf16 (bf16 halves the streamed HBM bytes; the kernel
    casts to f32 before any arithmetic).  neg_mse_dtype=bfloat16 halves the
    hard-negative-plane write and both top-k read-backs.
    """
    bs, _, H, W = conf_logits.shape
    C = label_cls_cf.shape[1]
    assert C == num_classes
    if W < 20:
        # mirrors torch.topk(neg_MSE[b], 20) along dim=-1 in the zero-object branch
        raise ValueError("zero-object branch requires W >= 20")
    HW = H * W

    out_itemsize = jnp.dtype(neg_mse_dtype).itemsize
    in_bytes = (conf_logits.dtype.itemsize * 1 + loc_pred.dtype.itemsize * 4 +
                label_cls_cf.dtype.itemsize * C + label_loc_sw_cf.dtype.itemsize * 5)
    bytes_per_row = _LANES * (in_bytes + out_itemsize)

    rows, tile_rows, num_tiles = _geometry(HW, max_tile_rows, bytes_per_row)
    HWp = rows * _LANES

    # Explicit scoped-VMEM limit: >= default (32 MiB), <= 48 MiB (v7x-safe).
    per_step = tile_rows * bytes_per_row + _SUBLANES * _LANES * 4
    vmem_limit = int(min(48 << 20, max(32 << 20, 2 * per_step + (8 << 20))))

    def _flat_pad(x, chan):
        x = x.reshape(bs, chan, HW)
        if HWp != HW:
            # Pad only to 128-lane alignment (<= 127 elements).  No pad op at all
            # when HW is already lane aligned.
            # TODO(synk): emit 128-lane-padded channel-first planes directly from
            # the target pipeline so this pad fuses into the detection head.
            x = jnp.pad(x, ((0, 0), (0, 0), (0, HWp - HW)))
        return x.reshape(bs, chan, rows, _LANES)

    conf = _flat_pad(conf_logits, 1)[:, 0]               # (bs, rows, 128)
    loc = _flat_pad(loc_pred, 4)                         # (bs, 4, rows, 128)
    labcls = _flat_pad(label_cls_cf, C)                  # (bs, C, rows, 128)
    labloc = _flat_pad(label_loc_sw_cf, 5)               # (bs, 5, rows, 128)

    kernel = functools.partial(
        _fbod_loss_kernel,
        feat_w=float(W),
        inv_feat_w=1.0 / float(W),
        sx=float(model_input_size[0]) / W,
        sy=float(model_input_size[1]) / H,
        scale=float(scale),
        num_classes=int(num_classes),
        tile_rows=tile_rows,
        hw_valid=int(HW))

    neg_mse, stats = pl.pallas_call(
        kernel,
        out_shape=(jax.ShapeDtypeStruct((bs, rows, _LANES), neg_mse_dtype),
                   jax.ShapeDtypeStruct((bs, num_tiles * _SUBLANES, _LANES),
                                        jnp.float32)),
        grid_spec=pltpu.PrefetchScalarGridSpec(
            num_scalar_prefetch=0,
            grid=(bs, num_tiles),
            in_specs=[
                pl.BlockSpec((1, tile_rows, _LANES), lambda b, t: (b, t, 0)),
                pl.BlockSpec((1, 4, tile_rows, _LANES), lambda b, t: (b, 0, t, 0)),
                pl.BlockSpec((1, C, tile_rows, _LANES), lambda b, t: (b, 0, t, 0)),
                pl.BlockSpec((1, 5, tile_rows, _LANES), lambda b, t: (b, 0, t, 0)),
            ],
            out_specs=(
                pl.BlockSpec((1, tile_rows, _LANES), lambda b, t: (b, t, 0)),
                pl.BlockSpec((1, _SUBLANES, _LANES), lambda b, t: (b, t, 0)),
            ),
        ),
        compiler_params=pltpu.CompilerParams(
            dimension_semantics=("parallel", "parallel"),
            vmem_limit_bytes=vmem_limit),
    )(conf, loc, labcls, labloc)

    # ---- finish the tiny per-batch reductions (per-tile partials -> scalars) ---
    sums = jnp.sum(stats.reshape(bs, num_tiles, _SUBLANES, _LANES), axis=(1, 3))
    neg_count = sums[:, 0]
    obj_count = sums[:, 1]
    pos_sum = sums[:, 2]
    ciou_sum = sums[:, 3]

    neg_flat = neg_mse.reshape(bs, HWp)                  # padded entries are exactly 0

    # ---- hard-negative mining with a bounded top-k ------------------------------
    K = min(int(max_neg_topk), HWp)
    topk_vals = jax.lax.top_k(neg_flat, K)[0].astype(jnp.float32)   # descending
    csum = jnp.cumsum(topk_vals, axis=-1)
    k_int = obj_count.astype(jnp.int32)
    n_int = neg_count.astype(jnp.int32)
    topk_n = jnp.minimum(jnp.minimum(2 * k_int, n_int), K)
    idx = jnp.clip(topk_n - 1, 0, K - 1)
    topk_sum = jnp.where(
        topk_n > 0,
        jnp.take_along_axis(csum, idx[:, None], axis=-1)[:, 0],
        0.0)
    conf_pos = (topk_sum + 10.0 * pos_sum) / jnp.maximum(obj_count, 1e-30)

    # zero-object branch: top-20 per row of the (H, W) map (torch.topk dim=-1)
    neg_2d = neg_flat[:, :HW].reshape(bs, H, W)
    top20 = jax.lax.top_k(neg_2d, 20)[0].astype(jnp.float32)
    conf_zero = jnp.sum(top20, axis=(1, 2)) / 10.0

    conf_per_b = jnp.where(obj_count > 0, conf_pos, conf_zero)
    CONF_loss = jnp.sum(conf_per_b)

    loc_per_b = jnp.where(obj_count > 0,
                          ciou_sum / jnp.maximum(obj_count, 1e-30), 0.0)
    LOC_loss = jnp.sum(loc_per_b)

    return (10.0 * CONF_loss + 100.0 * LOC_loss) / bs


# ----------------------------------------------------------------------------
# Pure-JAX/numpy reference (mirrors the PyTorch code 1:1) for validation
# ----------------------------------------------------------------------------
def _box_ciou_ref(b1, b2):
    b1_xy, b1_wh = b1[..., :2], b1[..., 2:4]
    b1_mins, b1_maxes = b1_xy - b1_wh / 2, b1_xy + b1_wh / 2
    b2_xy, b2_wh = b2[..., :2], b2[..., 2:4]
    b2_mins, b2_maxes = b2_xy - b2_wh / 2, b2_xy + b2_wh / 2
    i_mins = jnp.maximum(b1_mins, b2_mins)
    i_maxes = jnp.minimum(b1_maxes, b2_maxes)
    i_wh = jnp.maximum(i_maxes - i_mins, 0.0)
    inter = i_wh[..., 0] * i_wh[..., 1]
    a1 = b1_wh[..., 0] * b1_wh[..., 1]
    a2 = b2_wh[..., 0] * b2_wh[..., 1]
    union = a1 + a2 - inter
    iou = inter / jnp.maximum(union, 1e-6)
    cd = jnp.sum((b1_xy - b2_xy) ** 2, axis=-1)
    e_mins = jnp.minimum(b1_mins, b2_mins)
    e_maxes = jnp.maximum(b1_maxes, b2_maxes)
    e_wh = jnp.maximum(e_maxes - e_mins, 0.0)
    ed = jnp.sum(e_wh ** 2, axis=-1)
    ciou = iou - cd / jnp.maximum(ed, 1e-6)
    v = 4.0 / math.pi ** 2 * (
        jnp.arctan(b1_wh[..., 0] / jnp.maximum(b1_wh[..., 1], 1e-6)) -
        jnp.arctan(b2_wh[..., 0] / jnp.maximum(b2_wh[..., 1], 1e-6))) ** 2
    alpha = v / jnp.maximum(1.0 - iou + v, 1e-6)
    return ciou - alpha * v


def reference_loss(conf_logits, loc_pred, label_cls_cf, label_loc_cf,
                   model_input_size=(672, 384), scale=80.0, num_classes=2):
    bs, _, H, W = conf_logits.shape
    label_cls = jnp.transpose(label_cls_cf.astype(jnp.float32), (0, 2, 3, 1))
    label_loc_sw = jnp.transpose(label_loc_cf.astype(jnp.float32), (0, 2, 3, 1))

    pred_conf = jax.nn.sigmoid(conf_logits.reshape(bs, H, W).astype(jnp.float32))
    sx = model_input_size[0] / W
    sy = model_input_size[1] / H
    ref_x = (jnp.arange(W, dtype=jnp.float32) * sx + sx / 2)[None, None, :]
    ref_y = (jnp.arange(H, dtype=jnp.float32) * sy + sy / 2)[None, :, None]
    loc = jnp.transpose(loc_pred.astype(jnp.float32), (0, 2, 3, 1))
    x1 = loc[..., 0] * scale + ref_x
    y1 = loc[..., 1] * scale + ref_y
    x2 = loc[..., 2] * scale + ref_x
    y2 = loc[..., 3] * scale + ref_y
    w = x2 - x1
    h = y2 - y1
    cx = x1 + w / 2
    cy = y1 + h / 2
    pred_box = jnp.stack([cx, cy, w, h], axis=-1)

    labc = label_cls
    label_conf = jnp.sum(labc[..., 1:], axis=-1)
    cls_w = jnp.ceil(labc)
    weight_neg = cls_w[..., 0]
    if num_classes > 2:
        weight_pos = (1.0 - weight_neg) * jnp.sum(cls_w, axis=-1)
    else:
        weight_pos = cls_w[..., 1]
    label_loc = label_loc_sw[..., :4]
    sample_w = label_loc_sw[..., 4]

    mse = (label_conf - pred_conf) ** 2
    neg_mse = np.asarray(mse * weight_neg)
    pos_mse = np.asarray(mse * sample_w * weight_pos)
    neg_nums = np.asarray(jnp.sum(weight_neg, axis=(1, 2)))
    obj_nums = np.asarray(jnp.sum(weight_pos, axis=(1, 2)))

    ciou = _box_ciou_ref(pred_box, label_loc)
    ciou_loss = np.asarray((1.0 - ciou) * sample_w * weight_pos)

    CONF_loss = 0.0
    LOC_loss = 0.0
    for b in range(bs):
        if obj_nums[b] != 0:
            kk = int(obj_nums[b])
            topk = 2 * kk
            if topk > neg_nums[b]:
                topk = int(neg_nums[b])
            flat = np.sort(neg_mse[b].reshape(-1))[::-1]
            neg_topk_sum = float(np.sum(flat[:topk])) if topk > 0 else 0.0
            CONF_loss += (neg_topk_sum + 10.0 * float(np.sum(pos_mse[b]))) / obj_nums[b]
            LOC_loss += float(np.sum(ciou_loss[b])) / obj_nums[b]
        else:
            rows = np.sort(neg_mse[b], axis=-1)[:, ::-1][:, :20]
            CONF_loss += float(np.sum(rows)) / 10.0
    return (10.0 * CONF_loss + 100.0 * LOC_loss) / bs


# ----------------------------------------------------------------------------
if __name__ == "__main__":
    model_input_size = (672, 384)
    scale = 80.0
    num_classes = 2

    def _make_case(bs, H, W, obj_cells, seed):
        key = jax.random.PRNGKey(seed)
        k1, k2 = jax.random.split(key)
        conf_logits = jax.random.normal(k1, (bs, 1, H, W), dtype=jnp.float32)
        loc_pred = jax.random.normal(k2, (bs, 4, H, W), dtype=jnp.float32) * 0.1
        label_cls = jnp.zeros((bs, num_classes, H, W), jnp.float32).at[:, 0].set(1.0)
        label_loc = jnp.zeros((bs, 5, H, W), jnp.float32)
        sx = model_input_size[0] / W
        sy = model_input_size[1] / H
        for (b, r, c) in obj_cells:
            label_cls = label_cls.at[b, 0, r, c].set(0.0)
            label_cls = label_cls.at[b, 1, r, c].set(0.8)
            cxv = c * sx + sx / 2
            cyv = r * sy + sy / 2
            label_loc = label_loc.at[b, :, r, c].set(
                jnp.array([cxv, cyv, 40.0, 60.0, 1.0], jnp.float32))
        return conf_logits, loc_pred, label_cls, label_loc

    # Tolerance accounts for the approx-reciprocal (EUP) CIoU path and the
    # polynomial atan; both perturb per-pixel CIoU by O(1e-4) relative.
    RTOL, ATOL = 5e-3, 1e-3

    # Case 1: small lane-aligned map; batch 1 has zero objects -> top-20 branch.
    c1 = _make_case(2, 16, 32, [(0, 3, 5), (0, 7, 12), (0, 10, 20)], seed=0)
    loss1 = jax.block_until_ready(
        fbod_loss(*c1, model_input_size=model_input_size, scale=scale,
                  num_classes=num_classes))
    ref1 = reference_loss(*c1, model_input_size=model_input_size, scale=scale,
                          num_classes=num_classes)
    assert np.isfinite(float(loss1))
    np.testing.assert_allclose(float(loss1), float(ref1), rtol=RTOL, atol=ATOL)

    # Case 2: HW not lane-aligned + forced small tiles -> exercises the ragged
    # last tile and the in-kernel tail masking (garbage can never leak).
    c2 = _make_case(2, 20, 127, [(0, 2, 3), (0, 15, 100), (1, 19, 126)], seed=1)
    loss2 = jax.block_until_ready(
        fbod_loss(*c2, model_input_size=model_input_size, scale=scale,
                  num_classes=num_classes, max_tile_rows=8))
    ref2 = reference_loss(*c2, model_input_size=model_input_size, scale=scale,
                          num_classes=num_classes)
    assert np.isfinite(float(loss2))
    np.testing.assert_allclose(float(loss2), float(ref2), rtol=RTOL, atol=ATOL)

    # bf16 streaming + bf16 neg_mse smoke test (halves streamed / round-trip HBM
    # bytes; kernel math stays f32, safe on v5e which has no bf16 VPU).
    loss_bf16 = fbod_loss(c1[0].astype(jnp.bfloat16), c1[1].astype(jnp.bfloat16),
                          c1[2].astype(jnp.bfloat16), c1[3].astype(jnp.bfloat16),
                          model_input_size=model_input_size, scale=scale,
                          num_classes=num_classes, neg_mse_dtype=jnp.bfloat16)
    assert np.isfinite(float(jax.block_until_ready(loss_bf16)))

    print("KERNEL_OK")
</pallas_src>

<mosaic_0001>
module attributes {stable_mosaic.version = 11 : i64} {
  func.func @_fbod_loss_kernel(%arg0: i32, %arg1: i32, %arg2: memref<1x4x128xf32, #tpu.memory_space<vmem>>, %arg3: memref<1x4x4x128xf32, #tpu.memory_space<vmem>>, %arg4: memref<1x2x4x128xf32, #tpu.memory_space<vmem>>, %arg5: memref<1x5x4x128xf32, #tpu.memory_space<vmem>>, %arg6: memref<1x4x128xf32, #tpu.memory_space<vmem>>, %arg7: memref<1x8x128xf32, #tpu.memory_space<vmem>>) attributes {dimension_semantics = [#tpu.dimension_semantics<parallel>, #tpu.dimension_semantics<parallel>], iteration_bounds = array<i64: 2, 1>, scalar_prefetch = 0 : i64, scratch_operands = 0 : i64, tpu.core_type = #tpu.core_type<tc>, window_params = [{transform_indices = @transform_0, window_bounds = array<i64: 1, 4, 128>}, {transform_indices = @transform_1, window_bounds = array<i64: 1, 4, 4, 128>}, {transform_indices = @transform_2, window_bounds = array<i64: 1, 2, 4, 128>}, {transform_indices = @transform_3, window_bounds = array<i64: 1, 5, 4, 128>}, {transform_indices = @transform_4, window_bounds = array<i64: 1, 4, 128>}, {transform_indices = @transform_5, window_bounds = array<i64: 1, 8, 128>}]} {
    %0 = tpu.iota {dimensions = array<i32: 0>} : vector<4x128xi32>
    %1 = tpu.iota {dimensions = array<i32: 1>} : vector<4x128xi32>
    %c512_i32 = arith.constant 512 : i32
    %2 = arith.muli %arg1, %c512_i32 : i32
    %c128_i32 = arith.constant 128 : i32
    %3 = vector.broadcast %c128_i32 : i32 to vector<4x128xi32>
    %4 = arith.muli %0, %3 : vector<4x128xi32>
    %5 = vector.broadcast %2 : i32 to vector<4x128xi32>
    %6 = arith.addi %5, %4 : vector<4x128xi32>
    %7 = arith.addi %6, %1 : vector<4x128xi32>
    %c512_i32_0 = arith.constant 512 : i32
    %8 = vector.broadcast %c512_i32_0 : i32 to vector<4x128xi32>
    %9 = arith.cmpi slt, %7, %8 : vector<4x128xi32>
    %10 = arith.sitofp %7 : vector<4x128xi32> to vector<4x128xf32>
    %cst = arith.constant 5.000000e-01 : f32
    %11 = vector.broadcast %cst : f32 to vector<4x128xf32>
    %12 = arith.addf %10, %11 : vector<4x128xf32>
    %cst_1 = arith.constant 3.125000e-02 : f32
    %13 = vector.broadcast %cst_1 : f32 to vector<4x128xf32>
    %14 = arith.mulf %12, %13 : vector<4x128xf32>
    %15 = math.floor %14 : vector<4x128xf32>
    %cst_2 = arith.constant 3.200000e+01 : f32
    %16 = vector.broadcast %cst_2 : f32 to vector<4x128xf32>
    %17 = arith.mulf %15, %16 : vector<4x128xf32>
    %18 = arith.subf %10, %17 : vector<4x128xf32>
    %cst_3 = arith.constant 0.000000e+00 : f32
    %19 = vector.broadcast %cst_3 : f32 to vector<4x128xf32>
    %20 = arith.cmpf olt, %18, %19 : vector<4x128xf32>
    %cst_4 = arith.constant 1.000000e+00 : f32
    %21 = vector.broadcast %cst_4 : f32 to vector<4x128xf32>
    %22 = arith.subf %15, %21 : vector<4x128xf32>
    %23 = arith.select %20, %22, %15 : vector<4x128xi1>, vector<4x128xf32>
    %cst_5 = arith.constant 3.200000e+01 : f32
    %24 = vector.broadcast %cst_5 : f32 to vector<4x128xf32>
    %25 = arith.addf %18, %24 : vector<4x128xf32>
    %26 = arith.select %20, %25, %18 : vector<4x128xi1>, vector<4x128xf32>
    %cst_6 = arith.constant 3.200000e+01 : f32
    %27 = vector.broadcast %cst_6 : f32 to vector<4x128xf32>
    %28 = arith.cmpf oge, %26, %27 : vector<4x128xf32>
    %cst_7 = arith.constant 1.000000e+00 : f32
    %29 = vector.broadcast %cst_7 : f32 to vector<4x128xf32>
    %30 = arith.addf %23, %29 : vector<4x128xf32>
    %31 = arith.select %28, %30, %23 : vector<4x128xi1>, vector<4x128xf32>
    %cst_8 = arith.constant 3.200000e+01 : f32
    %32 = vector.broadcast %cst_8 : f32 to vector<4x128xf32>
    %33 = arith.subf %26, %32 : vector<4x128xf32>
    %34 = arith.select %28, %33, %26 : vector<4x128xi1>, vector<4x128xf32>
    %cst_9 = arith.constant 2.100000e+01 : f32
    %35 = vector.broadcast %cst_9 : f32 to vector<4x128xf32>
    %36 = arith.mulf %34, %35 : vector<4x128xf32>
    %cst_10 = arith.constant 1.050000e+01 : f32
    %37 = vector.broadcast %cst_10 : f32 to vector<4x128xf32>
    %38 = arith.addf %36, %37 : vector<4x128xf32>
    %cst_11 = arith.constant 2.400000e+01 : f32
    %39 = vector.broadcast %cst_11 : f32 to vector<4x128xf32>
    %40 = arith.mulf %31, %39 : vector<4x128xf32>
    %cst_12 = arith.constant 1.200000e+01 : f32
    %41 = vector.broadcast %cst_12 : f32 to vector<4x128xf32>
    %42 = arith.addf %40, %41 : vector<4x128xf32>
    %c0 = arith.constant 0 : index
    %c0_13 = arith.constant 0 : index
    %c0_14 = arith.constant 0 : index
    %43 = vector.load %arg2[%c0, %c0_13, %c0_14] : memref<1x4x128xf32, #tpu.memory_space<vmem>>, vector<1x4x128xf32>
    %44 = vector.shape_cast %43 : vector<1x4x128xf32> to vector<4x128xf32>
    %45 = arith.negf %44 : vector<4x128xf32>
    %46 = math.exp %45 : vector<4x128xf32>
    %cst_15 = arith.constant 1.000000e+00 : f32
    %47 = vector.broadcast %cst_15 : f32 to vector<4x128xf32>
    %48 = arith.addf %47, %46 : vector<4x128xf32>
    %49 = arith.divf %47, %48 : vector<4x128xf32>
    %c0_16 = arith.constant 0 : index
    %c0_17 = arith.constant 0 : index
    %c0_18 = arith.constant 0 : index
    %c0_19 = arith.constant 0 : index
    %50 = vector.load %arg4[%c0_16, %c0_17, %c0_18, %c0_19] : memref<1x2x4x128xf32, #tpu.memory_space<vmem>>, vector<1x2x4x128xf32>
    %51 = vector.shape_cast %50 : vector<1x2x4x128xf32> to vector<2x4x128xf32>
    %52 = math.ceil %51 : vector<2x4x128xf32>
    %53 = vector.extract_strided_slice %51 {offsets = [1, 0, 0], sizes = [1, 4, 128], strides = [1, 1, 1]} : vector<2x4x128xf32> to vector<1x4x128xf32>
    %54 = vector.shape_cast %53 : vector<1x4x128xf32> to vector<4x128xf32>
    %55 = vector.extract_strided_slice %52 {offsets = [1, 0, 0], sizes = [1, 4, 128], strides = [1, 1, 1]} : vector<2x4x128xf32> to vector<1x4x128xf32>
    %56 = vector.shape_cast %55 : vector<1x4x128xf32> to vector<4x128xf32>
    %57 = vector.extract_strided_slice %52 {offsets = [0, 0, 0], sizes = [1, 4, 128], strides = [1, 1, 1]} : vector<2x4x128xf32> to vector<1x4x128xf32>
    %58 = vector.shape_cast %57 : vector<1x4x128xf32> to vector<4x128xf32>
    %cst_20 = arith.constant 0.000000e+00 : f32
    %59 = vector.broadcast %cst_20 : f32 to vector<4x128xf32>
    %60 = arith.select %9, %58, %59 : vector<4x128xi1>, vector<4x128xf32>
    %cst_21 = arith.constant 0.000000e+00 : f32
    %61 = vector.broadcast %cst_21 : f32 to vector<4x128xf32>
    %62 = arith.select %9, %56, %61 : vector<4x128xi1>, vector<4x128xf32>
    %c0_22 = arith.constant 0 : index
    %c0_23 = arith.constant 0 : index
    %c0_24 = arith.constant 0 : index
    %c0_25 = arith.constant 0 : index
    %63 = vector.load %arg5[%c0_22, %c0_23, %c0_24, %c0_25] : memref<1x5x4x128xf32, #tpu.memory_space<vmem>>, vector<1x5x4x128xf32>
    %64 = vector.shape_cast %63 : vector<1x5x4x128xf32> to vector<5x4x128xf32>
    %65 = vector.extract_strided_slice %64 {offsets = [0, 0, 0], sizes = [1, 4, 128], strides = [1, 1, 1]} : vector<5x4x128xf32> to vector<1x4x128xf32>
    %66 = vector.shape_cast %65 : vector<1x4x128xf32> to vector<4x128xf32>
    %67 = vector.extract_strided_slice %64 {offsets = [1, 0, 0], sizes = [1, 4, 128], strides = [1, 1, 1]} : vector<5x4x128xf32> to vector<1x4x128xf32>
    %68 = vector.shape_cast %67 : vector<1x4x128xf32> to vector<4x128xf32>
    %69 = vector.extract_strided_slice %64 {offsets = [2, 0, 0], sizes = [1, 4, 128], strides = [1, 1, 1]} : vector<5x4x128xf32> to vector<1x4x128xf32>
    %70 = vector.shape_cast %69 : vector<1x4x128xf32> to vector<4x128xf32>
    %71 = vector.extract_strided_slice %64 {offsets = [3, 0, 0], sizes = [1, 4, 128], strides = [1, 1, 1]} : vector<5x4x128xf32> to vector<1x4x128xf32>
    %72 = vector.shape_cast %71 : vector<1x4x128xf32> to vector<4x128xf32>
    %73 = vector.extract_strided_slice %64 {offsets = [4, 0, 0], sizes = [1, 4, 128], strides = [1, 1, 1]} : vector<5x4x128xf32> to vector<1x4x128xf32>
    %74 = vector.shape_cast %73 : vector<1x4x128xf32> to vector<4x128xf32>
    %cst_26 = arith.constant 0.000000e+00 : f32
    %75 = vector.broadcast %cst_26 : f32 to vector<4x128xf32>
    %76 = arith.select %9, %74, %75 : vector<4x128xi1>, vector<4x128xf32>
    %77 = arith.mulf %76, %62 : vector<4x128xf32>
    %78 = arith.subf %54, %49 : vector<4x128xf32>
    %79 = arith.mulf %78, %78 : vector<4x128xf32>
    %cst_27 = arith.constant 0.000000e+00 : f32
    %80 = vector.broadcast %cst_27 : f32 to vector<4x128xf32>
    %81 = arith.select %9, %79, %80 : vector<4x128xi1>, vector<4x128xf32>
    %82 = arith.mulf %81, %60 : vector<4x128xf32>
    %c0_28 = arith.constant 0 : index
    %c0_29 = arith.constant 0 : index
    %c0_30 = arith.constant 0 : index
    %83 = vector.load %arg6[%c0_28, %c0_29, %c0_30] : memref<1x4x128xf32, #tpu.memory_space<vmem>>, vector<1x4x128xf32>
    %84 = vector.shape_cast %83 : vector<1x4x128xf32> to vector<4x128xf32>
    %85 = vector.shape_cast %82 : vector<4x128xf32> to vector<1x4x128xf32>
    tpu.vector_store %arg6[%c0_28, %c0_29, %c0_30], %85 {strides = array<i32>} : memref<1x4x128xf32, #tpu.memory_space<vmem>>, vector<1x4x128xf32>,
    %cst_31 = arith.constant dense<0.000000e+00> : vector<128xf32>
    %86 = vector.multi_reduction <add>, %60, %cst_31 [0] : vector<4x128xf32> to vector<128xf32>
    %87 = vector.shape_cast %86 : vector<128xf32> to vector<1x128xf32>
    %cst_32 = arith.constant dense<0.000000e+00> : vector<128xf32>
    %88 = vector.multi_reduction <add>, %62, %cst_32 [0] : vector<4x128xf32> to vector<128xf32>
    %89 = vector.shape_cast %88 : vector<128xf32> to vector<1x128xf32>
    %90 = arith.mulf %81, %77 : vector<4x128xf32>
    %cst_33 = arith.constant dense<0.000000e+00> : vector<128xf32>
    %91 = vector.multi_reduction <add>, %90, %cst_33 [0] : vector<4x128xf32> to vector<128xf32>
    %92 = vector.shape_cast %91 : vector<128xf32> to vector<1x128xf32>
    %c0_34 = arith.constant 0 : index
    %c0_35 = arith.constant 0 : index
    %c0_36 = arith.constant 0 : index
    %c0_37 = arith.constant 0 : index
    %93 = vector.load %arg3[%c0_34, %c0_35, %c0_36, %c0_37] : memref<1x4x4x128xf32, #tpu.memory_space<vmem>>, vector<1x1x4x128xf32>
    %94 = vector.shape_cast %93 : vector<1x1x4x128xf32> to vector<4x128xf32>
    %cst_38 = arith.constant 8.000000e+01 : f32
    %95 = vector.broadcast %cst_38 : f32 to vector<4x128xf32>
    %96 = arith.mulf %94, %95 : vector<4x128xf32>
    %97 = arith.addf %96, %38 : vector<4x128xf32>
    %c0_39 = arith.constant 0 : index
    %c1 = arith.constant 1 : index
    %c0_40 = arith.constant 0 : index
    %c0_41 = arith.constant 0 : index
    %98 = vector.load %arg3[%c0_39, %c1, %c0_40, %c0_41] : memref<1x4x4x128xf32, #tpu.memory_space<vmem>>, vector<1x1x4x128xf32>
    %99 = vector.shape_cast %98 : vector<1x1x4x128xf32> to vector<4x128xf32>
    %cst_42 = arith.constant 8.000000e+01 : f32
    %100 = vector.broadcast %cst_42 : f32 to vector<4x128xf32>
    %101 = arith.mulf %99, %100 : vector<4x128xf32>
    %102 = arith.addf %101, %42 : vector<4x128xf32>
    %c0_43 = arith.constant 0 : index
    %c2 = arith.constant 2 : index
    %c0_44 = arith.constant 0 : index
    %c0_45 = arith.constant 0 : index
    %103 = vector.load %arg3[%c0_43, %c2, %c0_44, %c0_45] : memref<1x4x4x128xf32, #tpu.memory_space<vmem>>, vector<1x1x4x128xf32>
    %104 = vector.shape_cast %103 : vector<1x1x4x128xf32> to vector<4x128xf32>
    %cst_46 = arith.constant 8.000000e+01 : f32
    %105 = vector.broadcast %cst_46 : f32 to vector<4x128xf32>
    %106 = arith.mulf %104, %105 : vector<4x128xf32>
    %107 = arith.addf %106, %38 : vector<4x128xf32>
    %c0_47 = arith.constant 0 : index
    %c3 = arith.constant 3 : index
    %c0_48 = arith.constant 0 : index
    %c0_49 = arith.constant 0 : index
    %108 = vector.load %arg3[%c0_47, %c3, %c0_48, %c0_49] : memref<1x4x4x128xf32, #tpu.memory_space<vmem>>, vector<1x1x4x128xf32>
    %109 = vector.shape_cast %108 : vector<1x1x4x128xf32> to vector<4x128xf32>
    %cst_50 = arith.constant 8.000000e+01 : f32
    %110 = vector.broadcast %cst_50 : f32 to vector<4x128xf32>
    %111 = arith.mulf %109, %110 : vector<4x128xf32>
    %112 = arith.addf %111, %42 : vector<4x128xf32>
    %113 = arith.subf %107, %97 : vector<4x128xf32>
    %114 = arith.subf %112, %102 : vector<4x128xf32>
    %cst_51 = arith.constant 5.000000e-01 : f32
    %115 = vector.broadcast %cst_51 : f32 to vector<4x128xf32>
    %116 = arith.mulf %113, %115 : vector<4x128xf32>
    %117 = arith.addf %97, %116 : vector<4x128xf32>
    %cst_52 = arith.constant 5.000000e-01 : f32
    %118 = vector.broadcast %cst_52 : f32 to vector<4x128xf32>
    %119 = arith.mulf %114, %118 : vector<4x128xf32>
    %120 = arith.addf %102, %119 : vector<4x128xf32>
    %cst_53 = arith.constant 5.000000e-01 : f32
    %121 = vector.broadcast %cst_53 : f32 to vector<4x128xf32>
    %122 = arith.mulf %70, %121 : vector<4x128xf32>
    %123 = arith.subf %66, %122 : vector<4x128xf32>
    %cst_54 = arith.constant 5.000000e-01 : f32
    %124 = vector.broadcast %cst_54 : f32 to vector<4x128xf32>
    %125 = arith.mulf %70, %124 : vector<4x128xf32>
    %126 = arith.addf %66, %125 : vector<4x128xf32>
    %cst_55 = arith.constant 5.000000e-01 : f32
    %127 = vector.broadcast %cst_55 : f32 to vector<4x128xf32>
    %128 = arith.mulf %72, %127 : vector<4x128xf32>
    %129 = arith.subf %68, %128 : vector<4x128xf32>
    %cst_56 = arith.constant 5.000000e-01 : f32
    %130 = vector.broadcast %cst_56 : f32 to vector<4x128xf32>
    %131 = arith.mulf %72, %130 : vector<4x128xf32>
    %132 = arith.addf %68, %131 : vector<4x128xf32>
    %133 = arith.minimumf %107, %126 : vector<4x128xf32>
    %134 = arith.maximumf %97, %123 : vector<4x128xf32>
    %135 = arith.subf %133, %134 : vector<4x128xf32>
    %cst_57 = arith.constant 0.000000e+00 : f32
    %136 = vector.broadcast %cst_57 : f32 to vector<4x128xf32>
    %137 = arith.maximumf %135, %136 : vector<4x128xf32>
    %138 = arith.minimumf %112, %132 : vector<4x128xf32>
    %139 = arith.maximumf %102, %129 : vector<4x128xf32>
    %140 = arith.subf %138, %139 : vector<4x128xf32>
    %cst_58 = arith.constant 0.000000e+00 : f32
    %141 = vector.broadcast %cst_58 : f32 to vector<4x128xf32>
    %142 = arith.maximumf %140, %141 : vector<4x128xf32>
    %143 = arith.mulf %137, %142 : vector<4x128xf32>
    %144 = arith.mulf %113, %114 : vector<4x128xf32>
    %145 = arith.mulf %70, %72 : vector<4x128xf32>
    %146 = arith.addf %144, %145 : vector<4x128xf32>
    %147 = arith.subf %146, %143 : vector<4x128xf32>
    %cst_59 = arith.constant 9.99999997E-7 : f32
    %148 = vector.broadcast %cst_59 : f32 to vector<4x128xf32>
    %149 = arith.maximumf %147, %148 : vector<4x128xf32>
    %150 = tpu.reciprocal %149 {approx = true} : vector<4x128xf32> -> vector<4x128xf32>
    %151 = arith.mulf %143, %150 : vector<4x128xf32>
    %152 = arith.subf %117, %66 : vector<4x128xf32>
    %153 = arith.mulf %152, %152 : vector<4x128xf32>
    %154 = arith.subf %120, %68 : vector<4x128xf32>
    %155 = arith.mulf %154, %154 : vector<4x128xf32>
    %156 = arith.addf %153, %155 : vector<4x128xf32>
    %157 = arith.maximumf %107, %126 : vector<4x128xf32>
    %158 = arith.minimumf %97, %123 : vector<4x128xf32>
    %159 = arith.subf %157, %158 : vector<4x128xf32>
    %cst_60 = arith.constant 0.000000e+00 : f32
    %160 = vector.broadcast %cst_60 : f32 to vector<4x128xf32>
    %161 = arith.maximumf %159, %160 : vector<4x128xf32>
    %162 = arith.maximumf %112, %132 : vector<4x128xf32>
    %163 = arith.minimumf %102, %129 : vector<4x128xf32>
    %164 = arith.subf %162, %163 : vector<4x128xf32>
    %cst_61 = arith.constant 0.000000e+00 : f32
    %165 = vector.broadcast %cst_61 : f32 to vector<4x128xf32>
    %166 = arith.maximumf %164, %165 : vector<4x128xf32>
    %167 = arith.mulf %161, %161 : vector<4x128xf32>
    %168 = arith.mulf %166, %166 : vector<4x128xf32>
    %169 = arith.addf %167, %168 : vector<4x128xf32>
    %cst_62 = arith.constant 9.99999997E-7 : f32
    %170 = vector.broadcast %cst_62 : f32 to vector<4x128xf32>
    %171 = arith.maximumf %169, %170 : vector<4x128xf32>
    %172 = tpu.reciprocal %171 {approx = true} : vector<4x128xf32> -> vector<4x128xf32>
    %173 = arith.mulf %156, %172 : vector<4x128xf32>
    %174 = arith.subf %151, %173 : vector<4x128xf32>
    %cst_63 = arith.constant 9.99999997E-7 : f32
    %175 = vector.broadcast %cst_63 : f32 to vector<4x128xf32>
    %176 = arith.maximumf %114, %175 : vector<4x128xf32>
    %177 = tpu.reciprocal %176 {approx = true} : vector<4x128xf32> -> vector<4x128xf32>
    %178 = arith.mulf %113, %177 : vector<4x128xf32>
    %179 = math.absf %178 : vector<4x128xf32>
    %cst_64 = arith.constant 1.000000e+00 : f32
    %180 = vector.broadcast %cst_64 : f32 to vector<4x128xf32>
    %181 = arith.cmpf ogt, %179, %180 : vector<4x128xf32>
    %182 = tpu.reciprocal %179 {approx = true} : vector<4x128xf32> -> vector<4x128xf32>
    %183 = arith.select %181, %182, %179 : vector<4x128xi1>, vector<4x128xf32>
    %184 = arith.mulf %183, %183 : vector<4x128xf32>
    %cst_65 = arith.constant 0.00282363896 : f32
    %185 = vector.broadcast %cst_65 : f32 to vector<4x128xf32>
    %186 = arith.mulf %185, %184 : vector<4x128xf32>
    %cst_66 = arith.constant -0.0159569029 : f32
    %187 = vector.broadcast %cst_66 : f32 to vector<4x128xf32>
    %188 = arith.addf %186, %187 : vector<4x128xf32>
    %189 = arith.mulf %188, %184 : vector<4x128xf32>
    %cst_67 = arith.constant 0.0425049886 : f32
    %190 = vector.broadcast %cst_67 : f32 to vector<4x128xf32>
    %191 = arith.addf %189, %190 : vector<4x128xf32>
    %192 = arith.mulf %191, %184 : vector<4x128xf32>
    %cst_68 = arith.constant -0.074890092 : f32
    %193 = vector.broadcast %cst_68 : f32 to vector<4x128xf32>
    %194 = arith.addf %192, %193 : vector<4x128xf32>
    %195 = arith.mulf %194, %184 : vector<4x128xf32>
    %cst_69 = arith.constant 0.106347933 : f32
    %196 = vector.broadcast %cst_69 : f32 to vector<4x128xf32>
    %197 = arith.addf %195, %196 : vector<4x128xf32>
    %198 = arith.mulf %197, %184 : vector<4x128xf32>
    %cst_70 = arith.constant -0.142027363 : f32
    %199 = vector.broadcast %cst_70 : f32 to vector<4x128xf32>
    %200 = arith.addf %198, %199 : vector<4x128xf32>
    %201 = arith.mulf %200, %184 : vector<4x128xf32>
    %cst_71 = arith.constant 0.199926957 : f32
    %202 = vector.broadcast %cst_71 : f32 to vector<4x128xf32>
    %203 = arith.addf %201, %202 : vector<4x128xf32>
    %204 = arith.mulf %203, %184 : vector<4x128xf32>
    %cst_72 = arith.constant -0.333331019 : f32
    %205 = vector.broadcast %cst_72 : f32 to vector<4x128xf32>
    %206 = arith.addf %204, %205 : vector<4x128xf32>
    %207 = arith.mulf %183, %184 : vector<4x128xf32>
    %208 = arith.mulf %207, %206 : vector<4x128xf32>
    %209 = arith.addf %183, %208 : vector<4x128xf32>
    %cst_73 = arith.constant 1.57079637 : f32
    %210 = vector.broadcast %cst_73 : f32 to vector<4x128xf32>
    %211 = arith.subf %210, %209 : vector<4x128xf32>
    %212 = arith.select %181, %211, %209 : vector<4x128xi1>, vector<4x128xf32>
    %cst_74 = arith.constant 0.000000e+00 : f32
    %213 = vector.broadcast %cst_74 : f32 to vector<4x128xf32>
    %214 = arith.cmpf olt, %178, %213 : vector<4x128xf32>
    %cst_75 = arith.constant 0.000000e+00 : f32
    %215 = vector.broadcast %cst_75 : f32 to vector<4x128xf32>
    %216 = arith.subf %215, %212 : vector<4x128xf32>
    %217 = arith.select %214, %216, %212 : vector<4x128xi1>, vector<4x128xf32>
    %cst_76 = arith.constant 9.99999997E-7 : f32
    %218 = vector.broadcast %cst_76 : f32 to vector<4x128xf32>
    %219 = arith.maximumf %72, %218 : vector<4x128xf32>
    %220 = tpu.reciprocal %219 {approx = true} : vector<4x128xf32> -> vector<4x128xf32>
    %221 = arith.mulf %70, %220 : vector<4x128xf32>
    %222 = math.absf %221 : vector<4x128xf32>
    %cst_77 = arith.constant 1.000000e+00 : f32
    %223 = vector.broadcast %cst_77 : f32 to vector<4x128xf32>
    %224 = arith.cmpf ogt, %222, %223 : vector<4x128xf32>
    %225 = tpu.reciprocal %222 {approx = true} : vector<4x128xf32> -> vector<4x128xf32>
    %226 = arith.select %224, %225, %222 : vector<4x128xi1>, vector<4x128xf32>
    %227 = arith.mulf %226, %226 : vector<4x128xf32>
    %cst_78 = arith.constant 0.00282363896 : f32
    %228 = vector.broadcast %cst_78 : f32 to vector<4x128xf32>
    %229 = arith.mulf %228, %227 : vector<4x128xf32>
    %cst_79 = arith.constant -0.0159569029 : f32
    %230 = vector.broadcast %cst_79 : f32 to vector<4x128xf32>
    %231 = arith.addf %229, %230 : vector<4x128xf32>
    %232 = arith.mulf %231, %227 : vector<4x128xf32>
    %cst_80 = arith.constant 0.0425049886 : f32
    %233 = vector.broadcast %cst_80 : f32 to vector<4x128xf32>
    %234 = arith.addf %232, %233 : vector<4x128xf32>
    %235 = arith.mulf %234, %227 : vector<4x128xf32>
    %cst_81 = arith.constant -0.074890092 : f32
    %236 = vector.broadcast %cst_81 : f32 to vector<4x128xf32>
    %237 = arith.addf %235, %236 : vector<4x128xf32>
    %238 = arith.mulf %237, %227 : vector<4x128xf32>
    %cst_82 = arith.constant 0.106347933 : f32
    %239 = vector.broadcast %cst_82 : f32 to vector<4x128xf32>
    %240 = arith.addf %238, %239 : vector<4x128xf32>
    %241 = arith.mulf %240, %227 : vector<4x128xf32>
    %cst_83 = arith.constant -0.142027363 : f32
    %242 = vector.broadcast %cst_83 : f32 to vector<4x128xf32>
    %243 = arith.addf %241, %242 : vector<4x128xf32>
    %244 = arith.mulf %243, %227 : vector<4x128xf32>
    %cst_84 = arith.constant 0.199926957 : f32
    %245 = vector.broadcast %cst_84 : f32 to vector<4x128xf32>
    %246 = arith.addf %244, %245 : vector<4x128xf32>
    %247 = arith.mulf %246, %227 : vector<4x128xf32>
    %cst_85 = arith.constant -0.333331019 : f32
    %248 = vector.broadcast %cst_85 : f32 to vector<4x128xf32>
    %249 = arith.addf %247, %248 : vector<4x128xf32>
    %250 = arith.mulf %226, %227 : vector<4x128xf32>
    %251 = arith.mulf %250, %249 : vector<4x128xf32>
    %252 = arith.addf %226, %251 : vector<4x128xf32>
    %cst_86 = arith.constant 1.57079637 : f32
    %253 = vector.broadcast %cst_86 : f32 to vector<4x128xf32>
    %254 = arith.subf %253, %252 : vector<4x128xf32>
    %255 = arith.select %224, %254, %252 : vector<4x128xi1>, vector<4x128xf32>
    %cst_87 = arith.constant 0.000000e+00 : f32
    %256 = vector.broadcast %cst_87 : f32 to vector<4x128xf32>
    %257 = arith.cmpf olt, %221, %256 : vector<4x128xf32>
    %cst_88 = arith.constant 0.000000e+00 : f32
    %258 = vector.broadcast %cst_88 : f32 to vector<4x128xf32>
    %259 = arith.subf %258, %255 : vector<4x128xf32>
    %260 = arith.select %257, %259, %255 : vector<4x128xi1>, vector<4x128xf32>
    %261 = arith.subf %217, %260 : vector<4x128xf32>
    %262 = arith.mulf %261, %261 : vector<4x128xf32>
    %cst_89 = arith.constant 0.405284733 : f32
    %263 = vector.broadcast %cst_89 : f32 to vector<4x128xf32>
    %264 = arith.mulf %263, %262 : vector<4x128xf32>
    %cst_90 = arith.constant 1.000000e+00 : f32
    %265 = vector.broadcast %cst_90 : f32 to vector<4x128xf32>
    %266 = arith.subf %265, %151 : vector<4x128xf32>
    %267 = arith.addf %266, %264 : vector<4x128xf32>
    %cst_91 = arith.constant 9.99999997E-7 : f32
    %268 = vector.broadcast %cst_91 : f32 to vector<4x128xf32>
    %269 = arith.maximumf %267, %268 : vector<4x128xf32>
    %270 = tpu.reciprocal %269 {approx = true} : vector<4x128xf32> -> vector<4x128xf32>
    %271 = arith.mulf %264, %270 : vector<4x128xf32>
    %272 = arith.mulf %271, %264 : vector<4x128xf32>
    %273 = arith.subf %174, %272 : vector<4x128xf32>
    %cst_92 = arith.constant 1.000000e+00 : f32
    %274 = vector.broadcast %cst_92 : f32 to vector<4x128xf32>
    %275 = arith.subf %274, %273 : vector<4x128xf32>
    %276 = arith.mulf %275, %77 : vector<4x128xf32>
    %cst_93 = arith.constant 0.000000e+00 : f32
    %277 = vector.broadcast %cst_93 : f32 to vector<4x128xf32>
    %278 = arith.select %9, %276, %277 : vector<4x128xi1>, vector<4x128xf32>
    %cst_94 = arith.constant dense<0.000000e+00> : vector<128xf32>
    %279 = vector.multi_reduction <add>, %278, %cst_94 [0] : vector<4x128xf32> to vector<128xf32>
    %280 = vector.shape_cast %279 : vector<128xf32> to vector<1x128xf32>
    %281 = tpu.iota {dimensions = array<i32: 0>} : vector<8x128xi32>
    %c0_i32 = arith.constant 0 : i32
    %282 = vector.broadcast %c0_i32 : i32 to vector<8x128xi32>
    %283 = arith.cmpi eq, %281, %282 : vector<8x128xi32>
    %cst_95 = arith.constant 0.000000e+00 : f32
    %284 = vector.shape_cast %87 : vector<1x128xf32> to vector<1x128xf32>
    %285 = vector.broadcast %284 : vector<1x128xf32> to vector<8x128xf32>
    %286 = vector.broadcast %cst_95 : f32 to vector<8x128xf32>
    %287 = arith.select %283, %285, %286 : vector<8x128xi1>, vector<8x128xf32>
    %c1_i32 = arith.constant 1 : i32
    %288 = vector.broadcast %c1_i32 : i32 to vector<8x128xi32>
    %289 = arith.cmpi eq, %281, %288 : vector<8x128xi32>
    %cst_96 = arith.constant 0.000000e+00 : f32
    %290 = vector.shape_cast %89 : vector<1x128xf32> to vector<1x128xf32>
    %291 = vector.broadcast %290 : vector<1x128xf32> to vector<8x128xf32>
    %292 = vector.broadcast %cst_96 : f32 to vector<8x128xf32>
    %293 = arith.select %289, %291, %292 : vector<8x128xi1>, vector<8x128xf32>
    %294 = arith.addf %287, %293 : vector<8x128xf32>
    %c2_i32 = arith.constant 2 : i32
    %295 = vector.broadcast %c2_i32 : i32 to vector<8x128xi32>
    %296 = arith.cmpi eq, %281, %295 : vector<8x128xi32>
    %cst_97 = arith.constant 0.000000e+00 : f32
    %297 = vector.shape_cast %92 : vector<1x128xf32> to vector<1x128xf32>
    %298 = vector.broadcast %297 : vector<1x128xf32> to vector<8x128xf32>
    %299 = vector.broadcast %cst_97 : f32 to vector<8x128xf32>
    %300 = arith.select %296, %298, %299 : vector<8x128xi1>, vector<8x128xf32>
    %301 = arith.addf %294, %300 : vector<8x128xf32>
    %c3_i32 = arith.constant 3 : i32
    %302 = vector.broadcast %c3_i32 : i32 to vector<8x128xi32>
    %303 = arith.cmpi eq, %281, %302 : vector<8x128xi32>
    %cst_98 = arith.constant 0.000000e+00 : f32
    %304 = vector.shape_cast %280 : vector<1x128xf32> to vector<1x128xf32>
    %305 = vector.broadcast %304 : vector<1x128xf32> to vector<8x128xf32>
    %306 = vector.broadcast %cst_98 : f32 to vector<8x128xf32>
    %307 = arith.select %303, %305, %306 : vector<8x128xi1>, vector<8x128xf32>
    %308 = arith.addf %301, %307 : vector<8x128xf32>
    %c0_99 = arith.constant 0 : index
    %c0_100 = arith.constant 0 : index
    %c0_101 = arith.constant 0 : index
    %309 = vector.load %arg7[%c0_99, %c0_100, %c0_101] : memref<1x8x128xf32, #tpu.memory_space<vmem>>, vector<1x8x128xf32>
    %310 = vector.shape_cast %309 : vector<1x8x128xf32> to vector<8x128xf32>
    %311 = vector.shape_cast %308 : vector<8x128xf32> to vector<1x8x128xf32>
    tpu.vector_store %arg7[%c0_99, %c0_100, %c0_101], %311 {strides = array<i32>} : memref<1x8x128xf32, #tpu.memory_space<vmem>>, vector<1x8x128xf32>,
    return
  }
  func.func @transform_0(%arg0: i32, %arg1: i32) -> (i32, i32, i32) {
    %c0_i32 = arith.constant 0 : i32
    %c0_i32_0 = arith.constant 0 : i32
    return %arg0, %arg1, %c0_i32 : i32, i32, i32
  }
  func.func @transform_1(%arg0: i32, %arg1: i32) -> (i32, i32, i32, i32) {
    %c0_i32 = arith.constant 0 : i32
    %c0_i32_0 = arith.constant 0 : i32
    %c0_i32_1 = arith.constant 0 : i32
    return %arg0, %c0_i32, %arg1, %c0_i32_0 : i32, i32, i32, i32
  }
  func.func @transform_2(%arg0: i32, %arg1: i32) -> (i32, i32, i32, i32) {
    %c0_i32 = arith.constant 0 : i32
    %c0_i32_0 = arith.constant 0 : i32
    %c0_i32_1 = arith.constant 0 : i32
    return %arg0, %c0_i32, %arg1, %c0_i32_0 : i32, i32, i32, i32
  }
  func.func @transform_3(%arg0: i32, %arg1: i32) -> (i32, i32, i32, i32) {
    %c0_i32 = arith.constant 0 : i32
    %c0_i32_0 = arith.constant 0 : i32
    %c0_i32_1 = arith.constant 0 : i32
    return %arg0, %c0_i32, %arg1, %c0_i32_0 : i32, i32, i32, i32
  }
  func.func @transform_4(%arg0: i32, %arg1: i32) -> (i32, i32, i32) {
    %c0_i32 = arith.constant 0 : i32
    %c0_i32_0 = arith.constant 0 : i32
    return %arg0, %arg1, %c0_i32 : i32, i32, i32
  }
  func.func @transform_5(%arg0: i32, %arg1: i32) -> (i32, i32, i32) {
    %c0_i32 = arith.constant 0 : i32
    %c0_i32_0 = arith.constant 0 : i32
    return %arg0, %arg1, %c0_i32 : i32, i32, i32
  }
}

</mosaic_0001>

<llo_original>
// kernel: fbod_loss.1
$region0: #{fbod_loss.1}
  #allocation0 [shape = 'u32[]', space=smem, size = 0x4, offset = 0x4, fixed_abs, tag = 'smem constant byte address 0x4 - core index']
  #allocation1 [shape = 'u32[144,128]{1,0:T(1,128)}', space=vmem, size = 0x12000, scoped, tag = 'internal scratch']
  %s0 = inlined_call_operand.vmem [shape: f32[2,4,128], index: 0, kind: input, shape index: {}]
  %s1 = inlined_call_operand.vmem [shape: f32[2,4,4,128], index: 1, kind: input, shape index: {}]
  %s2 = inlined_call_operand.vmem [shape: f32[2,2,4,128], index: 2, kind: input, shape index: {}]
  %s3 = inlined_call_operand.vmem [shape: f32[2,5,4,128], index: 3, kind: input, shape index: {}]
  %s4 = inlined_call_operand.vmem [shape: f32[2,4,128], index: 4, kind: output, shape index: {0}]
  %s5 = inlined_call_operand.vmem [shape: f32[2,8,128], index: 5, kind: output, shape index: {1}]
  %6 = xla_tuple %s4, %s5
  %s7 = sld [smem:[#allocation0]]
  $region57: #{fbod_loss.1} parent=0
    _
  %s9 = ssub.s32 1, %s7
  %s10 = scalar_select 0, %s9, %s7
  loop: start=0, step=1, limit=4
  $region2: #{fbod_loss.1} parent=0 // loop_pre_header
    _
  $region3: #{fbod_loss.1} parent=0 // loop_header
    %s12 = sphi 0, %s16
    %p13 = scmp.ge.s32.totalorder %s12, 4
    %s19 = sphi 0, %s31
    %s20 = sphi 0, %s27
    %s21 = sphi 0, %s19
    %s22 = sphi 0, %s20
    %s23 = sphi 0, %s21
    %s24 = sphi 0, %s22
    %s36 = sphi 0, %s38
    %s39 = sphi 0, %s36
    %s40 = sphi 0, %s39
    %s56 = sphi 0, %s40
    %s64 = sphi 0, %s66
    %s67 = sphi 0, %s64
    %s68 = sphi 0, %s67
    %s84 = sphi 0, %s68
    %s92 = sphi 0, %s94
    %s95 = sphi 0, %s92
    %s96 = sphi 0, %s95
    %s112 = sphi 0, %s96
    %s120 = sphi 0, %s122
    %s123 = sphi 0, %s120
    %s124 = sphi 0, %s123
    %s140 = sphi 0, %s124
    %s148 = sphi 0, %s150
    %s151 = sphi 0, %s148
    %s152 = sphi 0, %s151
    %s168 = sphi 0, %s152
    %s176 = sphi 0, %s178
    %s179 = sphi 0, %s176
    %s180 = sphi 0, %s179
    %s196 = sphi 0, %s180
  $region4: #{fbod_loss.1} parent=0 // loop_header_branch
    %15 = sbr.rel (%p13) target = $region8
  $region5: #{fbod_loss.1} parent=0 // loop_body
    %s17 = ssub.s32 %s12, 1
    %s18 = ssub.s32 %s12, 2
    %s25 = sadd.s32 1, %s20
    %p26 = scmp.ge.s32.totalorder %s25, 1
    %s27 = scalar_select %p26, 0, %s25
    %s28 = sadd.s32 1, %s19
    %s29 = scalar_select %p26, %s28, %s19
    %p30 = scmp.ge.s32.totalorder %s29, 2
    %s31 = scalar_select %p30, 0, %s29
    %s32 = ssub.s32 %s19, %s31
    %s33 = ssub.s32 %s20, %s27
    %s34 = sor.u32 %s32, %s33
    %p35 = scmp.eq.s32.totalorder %s34, 0
    %s37 = sadd.s32 %s36, 1
    %s38 = scalar_select %p35, %s36, %s37
    %p41 = pneg %p35
    %p42 = scmp.eq.s32.totalorder %s12, 1
    %p43 = por %p41, %p42
    %p44 = scmp.ne.s32.totalorder %s36, %s39
    %p45 = scmp.eq.s32.totalorder %s12, 0
    %p46 = por %p44, %p45
    %p47 = scmp.ne.s32.totalorder %s36, %s39
    %p48 = scmp.eq.s32.totalorder %s17, 1
    %p49 = por %p47, %p48
    %p50 = scmp.ne.s32.totalorder %s39, %s40
    %p51 = scmp.eq.s32.totalorder %s17, 0
    %p52 = por %p50, %p51
    %p53 = scmp.ne.s32.totalorder %s39, %s40
    %p54 = scmp.eq.s32.totalorder %s18, 1
    %p55 = por %p53, %p54
    %p57 = scmp.ne.s32.totalorder %s40, %s56
    %p58 = scmp.eq.s32.totalorder %s18, 0
    %p59 = por %p57, %p58
    %s60 = ssub.s32 %s19, %s31
    %s61 = ssub.s32 %s20, %s27
    %s62 = sor.u32 %s60, %s61
    %p63 = scmp.eq.s32.totalorder %s62, 0
    %s65 = sadd.s32 %s64, 1
    %s66 = scalar_select %p63, %s64, %s65
    %p69 = pneg %p63
    %p70 = scmp.eq.s32.totalorder %s12, 1
    %p71 = por %p69, %p70
    %p72 = scmp.ne.s32.totalorder %s64, %s67
    %p73 = scmp.eq.s32.totalorder %s12, 0
    %p74 = por %p72, %p73
    %p75 = scmp.ne.s32.totalorder %s64, %s67
    %p76 = scmp.eq.s32.totalorder %s17, 1
    %p77 = por %p75, %p76
    %p78 = scmp.ne.s32.totalorder %s67, %s68
    %p79 = scmp.eq.s32.totalorder %s17, 0
    %p80 = por %p78, %p79
    %p81 = scmp.ne.s32.totalorder %s67, %s68
    %p82 = scmp.eq.s32.totalorder %s18, 1
    %p83 = por %p81, %p82
    %p85 = scmp.ne.s32.totalorder %s68, %s84
    %p86 = scmp.eq.s32.totalorder %s18, 0
    %p87 = por %p85, %p86
    %s88 = ssub.s32 %s19, %s31
    %s89 = ssub.s32 %s20, %s27
    %s90 = sor.u32 %s88, %s89
    %p91 = scmp.eq.s32.totalorder %s90, 0
    %s93 = sadd.s32 %s92, 1
    %s94 = scalar_select %p91, %s92, %s93
    %p97 = pneg %p91
    %p98 = scmp.eq.s32.totalorder %s12, 1
    %p99 = por %p97, %p98
    %p100 = scmp.ne.s32.totalorder %s92, %s95
    %p101 = scmp.eq.s32.totalorder %s12, 0
    %p102 = por %p100, %p101
    %p103 = scmp.ne.s32.totalorder %s92, %s95
    %p104 = scmp.eq.s32.totalorder %s17, 1
    %p105 = por %p103, %p104
    %p106 = scmp.ne.s32.totalorder %s95, %s96
    %p107 = scmp.eq.s32.totalorder %s17, 0
    %p108 = por %p106, %p107
    %p109 = scmp.ne.s32.totalorder %s95, %s96
    %p110 = scmp.eq.s32.totalorder %s18, 1
    %p111 = por %p109, %p110
    %p113 = scmp.ne.s32.totalorder %s96, %s112
    %p114 = scmp.eq.s32.totalorder %s18, 0
    %p115 = por %p113, %p114
    %s116 = ssub.s32 %s19, %s31
    %s117 = ssub.s32 %s20, %s27
    %s118 = sor.u32 %s116, %s117
    %p119 = scmp.eq.s32.totalorder %s118, 0
    %s121 = sadd.s32 %s120, 1
    %s122 = scalar_select %p119, %s120, %s121
    %p125 = pneg %p119
    %p126 = scmp.eq.s32.totalorder %s12, 1
    %p127 = por %p125, %p126
    %p128 = scmp.ne.s32.totalorder %s120, %s123
    %p129 = scmp.eq.s32.totalorder %s12, 0
    %p130 = por %p128, %p129
    %p131 = scmp.ne.s32.totalorder %s120, %s123
    %p132 = scmp.eq.s32.totalorder %s17, 1
    %p133 = por %p131, %p132
    %p134 = scmp.ne.s32.totalorder %s123, %s124
    %p135 = scmp.eq.s32.totalorder %s17, 0
    %p136 = por %p134, %p135
    %p137 = scmp.ne.s32.totalorder %s123, %s124
    %p138 = scmp.eq.s32.totalorder %s18, 1
    %p139 = por %p137, %p138
    %p141 = scmp.ne.s32.totalorder %s124, %s140
    %p142 = scmp.eq.s32.totalorder %s18, 0
    %p143 = por %p141, %p142
    %s144 = ssub.s32 %s19, %s31
    %s145 = ssub.s32 %s20, %s27
    %s146 = sor.u32 %s144, %s145
    %p147 = scmp.eq.s32.totalorder %s146, 0
    %s149 = sadd.s32 %s148, 1
    %s150 = scalar_select %p147, %s148, %s149
    %p153 = pneg %p147
    %p154 = scmp.eq.s32.totalorder %s12, 1
    %p155 = por %p153, %p154
    %p156 = scmp.ne.s32.totalorder %s148, %s151
    %p157 = scmp.eq.s32.totalorder %s12, 0
    %p158 = por %p156, %p157
    %p159 = scmp.ne.s32.totalorder %s148, %s151
    %p160 = scmp.eq.s32.totalorder %s17, 1
    %p161 = por %p159, %p160
    %p162 = scmp.ne.s32.totalorder %s151, %s152
    %p163 = scmp.eq.s32.totalorder %s17, 0
    %p164 = por %p162, %p163
    %p165 = scmp.ne.s32.totalorder %s151, %s152
    %p166 = scmp.eq.s32.totalorder %s18, 1
    %p167 = por %p165, %p166
    %p169 = scmp.ne.s32.totalorder %s152, %s168
    %p170 = scmp.eq.s32.totalorder %s18, 0
    %p171 = por %p169, %p170
    %s172 = ssub.s32 %s19, %s31
    %s173 = ssub.s32 %s20, %s27
    %s174 = sor.u32 %s172, %s173
    %p175 = scmp.eq.s32.totalorder %s174, 0
    %s177 = sadd.s32 %s176, 1
    %s178 = scalar_select %p175, %s176, %s177
    %p181 = pneg %p175
    %p182 = scmp.eq.s32.totalorder %s12, 1
    %p183 = por %p181, %p182
    %p184 = scmp.ne.s32.totalorder %s176, %s179
    %p185 = scmp.eq.s32.totalorder %s12, 0
    %p186 = por %p184, %p185
    %p187 = scmp.ne.s32.totalorder %s176, %s179
    %p188 = scmp.eq.s32.totalorder %s17, 1
    %p189 = por %p187, %p188
    %p190 = scmp.ne.s32.totalorder %s179, %s180
    %p191 = scmp.eq.s32.totalorder %s17, 0
    %p192 = por %p190, %p191
    %p193 = scmp.ne.s32.totalorder %s179, %s180
    %p194 = scmp.eq.s32.totalorder %s18, 1
    %p195 = por %p193, %p194
    %p197 = scmp.ne.s32.totalorder %s180, %s196
    %p198 = scmp.eq.s32.totalorder %s18, 0
    %p199 = por %p197, %p198
    %p200 = scmp.le.s32.totalorder 1, %s12
    %p201 = scmp.lt.s32.totalorder %s12, 3
    %p202 = pnand %p200, %p201
    %p203 = pneg %p202
    // Predicated region
    $region9: #{fbod_loss.1} parent=5 // pred_check
      _
    $region10: #{fbod_loss.1} parent=5 // pred_check_branch
      %205 = sbr.rel (%p202) target = $region12
    $region11: #{fbod_loss.1} parent=5 // pred_region
      %s206 = ssub.s32 %s12, 1
    $region12: #{fbod_loss.1} parent=5 // pred_fallthru
      _
    %p207 = scmp.lt.s32.totalorder %s12, 2
    // Predicated region
    $region13: #{fbod_loss.1} parent=5 // pred_check
      %p208 = pneg %p207
    $region14: #{fbod_loss.1} parent=5 // pred_check_branch
      %210 = sbr.rel (%p208) target = $region16
    $region15: #{fbod_loss.1} parent=5 // pred_region
      // Predicated region
      $region17: #{fbod_loss.1} parent=15 // pred_check
        %p211 = pneg %p46
      $region18: #{fbod_loss.1} parent=15 // pred_check_branch
        %213 = sbr.rel (%p211) target = $region20
      $region19: #{fbod_loss.1} parent=15 // pred_region
        %p214 = scmp.lt.s32.totalorder %s19, 1
        %s215 = scalar_select %p214, %s19, 1
        %p216 = scmp.lt.s32.totalorder %s20, 0
        %s217 = scalar_select %p216, %s20, 0
        %s218 = sadd.s32 %s217, %s215
        %s219 = smul.addr %s218, 4
        %s220 = scalar_lea.vmem %s0, %s219
      $region20: #{fbod_loss.1} parent=15 // pred_fallthru
        _
      // Predicated region
      $region21: #{fbod_loss.1} parent=15 // pred_check
        %p221 = pneg %p74
      $region22: #{fbod_loss.1} parent=15 // pred_check_branch
        %223 = sbr.rel (%p221) target = $region24
      $region23: #{fbod_loss.1} parent=15 // pred_region
        %p224 = scmp.lt.s32.totalorder %s19, 1
        %s225 = scalar_select %p224, %s19, 1
        %p226 = scmp.lt.s32.totalorder %s20, 0
        %s227 = scalar_select %p226, %s20, 0
        %s228 = smul.addr %s225, 4
        %s229 = sadd.s32 %s227, %s228
        %s230 = smul.addr %s229, 4
        %s231 = scalar_lea.vmem %s1, %s230
      $region24: #{fbod_loss.1} parent=15 // pred_fallthru
        _
      // Predicated region
      $region25: #{fbod_loss.1} parent=15 // pred_check
        %p232 = pneg %p102
      $region26: #{fbod_loss.1} parent=15 // pred_check_branch
        %234 = sbr.rel (%p232) target = $region28
      $region27: #{fbod_loss.1} parent=15 // pred_region
        %p235 = scmp.lt.s32.totalorder %s19, 1
        %s236 = scalar_select %p235, %s19, 1
        %p237 = scmp.lt.s32.totalorder %s20, 0
        %s238 = scalar_select %p237, %s20, 0
        %s239 = smul.addr %s236, 2
        %s240 = sadd.s32 %s238, %s239
        %s241 = smul.addr %s240, 4
        %s242 = scalar_lea.vmem %s2, %s241
      $region28: #{fbod_loss.1} parent=15 // pred_fallthru
        _
      // Predicated region
      $region29: #{fbod_loss.1} parent=15 // pred_check
        %p243 = pneg %p130
      $region30: #{fbod_loss.1} parent=15 // pred_check_branch
        %245 = sbr.rel (%p243) target = $region32
      $region31: #{fbod_loss.1} parent=15 // pred_region
        %p246 = scmp.lt.s32.totalorder %s19, 1
        %s247 = scalar_select %p246, %s19, 1
        %p248 = scmp.lt.s32.totalorder %s20, 0
        %s249 = scalar_select %p248, %s20, 0
        %s250 = smul.addr %s247, 5
        %s251 = sadd.s32 %s249, %s250
        %s252 = smul.addr %s251, 4
        %s253 = scalar_lea.vmem %s3, %s252
      $region32: #{fbod_loss.1} parent=15 // pred_fallthru
        _
    $region16: #{fbod_loss.1} parent=5 // pred_fallthru
      _
    %p254 = scmp.le.s32.totalorder 1, %s12
    %p255 = scmp.lt.s32.totalorder %s12, 3
    %p256 = pnand %p254, %p255
    %p257 = pneg %p256
    // Predicated region
    $region33: #{fbod_loss.1} parent=5 // pred_check
      _
    $region34: #{fbod_loss.1} parent=5 // pred_check_branch
      %259 = sbr.rel (%p256) target = $region36
    $region35: #{fbod_loss.1} parent=5 // pred_region
      %s260 = ssub.s32 %s12, 1
      %p261 = scmp.lt.s32.totalorder %s21, 1
      %s262 = scalar_select %p261, %s21, 1
      %p263 = scmp.lt.s32.totalorder %s22, 0
      %s264 = scalar_select %p263, %s22, 0
      %s265 = sadd.s32 %s264, %s262
      %s266 = smul.addr %s265, 4
      %s267 = scalar_lea.vmem %s0, %s266
      %p268 = pneg %p52
      %p269 = pneg %p49
      %p270 = scmp.lt.s32.totalorder %s21, 1
      %s271 = scalar_select %p270, %s21, 1
      %p272 = scmp.lt.s32.totalorder %s22, 0
      %s273 = scalar_select %p272, %s22, 0
      %s274 = smul.addr %s271, 4
      %s275 = sadd.s32 %s273, %s274
      %s276 = smul.addr %s275, 4
      %s277 = scalar_lea.vmem %s1, %s276
      %p278 = pneg %p80
      %p279 = pneg %p77
      %p280 = scmp.lt.s32.totalorder %s21, 1
      %s281 = scalar_select %p280, %s21, 1
      %p282 = scmp.lt.s32.totalorder %s22, 0
      %s283 = scalar_select %p282, %s22, 0
      %s284 = smul.addr %s281, 2
      %s285 = sadd.s32 %s283, %s284
      %s286 = smul.addr %s285, 4
      %s287 = scalar_lea.vmem %s2, %s286
      %p288 = pneg %p108
      %p289 = pneg %p105
      %p290 = scmp.lt.s32.totalorder %s21, 1
      %s291 = scalar_select %p290, %s21, 1
      %p292 = scmp.lt.s32.totalorder %s22, 0
      %s293 = scalar_select %p292, %s22, 0
      %s294 = smul.addr %s291, 5
      %s295 = sadd.s32 %s293, %s294
      %s296 = smul.addr %s295, 4
      %s297 = scalar_lea.vmem %s3, %s296
      %p298 = pneg %p136
      %p299 = pneg %p133
      %p300 = pneg %p164
      %p301 = pneg %p161
      %p302 = scmp.lt.s32.totalorder %s21, 1
      %s303 = scalar_select %p302, %s21, 1
      %p304 = scmp.lt.s32.totalorder %s22, 0
      %s305 = scalar_select %p304, %s22, 0
      %s306 = sadd.s32 %s305, %s303
      %s307 = smul.addr %s306, 4
      %s308 = scalar_lea.vmem %s4, %s307
      %p309 = pneg %p192
      %p310 = pneg %p189
      %p311 = scmp.lt.s32.totalorder %s21, 1
      %s312 = scalar_select %p311, %s21, 1
      %p313 = scmp.lt.s32.totalorder %s22, 0
      %s314 = scalar_select %p313, %s22, 0
      %s315 = sadd.s32 %s314, %s312
      %s316 = smul.addr %s315, 8
      %s317 = scalar_lea.vmem %s5, %s316
      %p318 = scmp.lt.s32.totalorder %s21, 1
      %s319 = scalar_select %p318, %s21, 1
      %p320 = scmp.lt.s32.totalorder %s22, 0
      %s321 = scalar_select %p320, %s22, 0
      %s322 = sadd.s32 %s321, %s319
      %s323 = smul.addr %s322, 4
      %s324 = scalar_lea.vmem %s0, %s323
      %p325 = scmp.lt.s32.totalorder %s21, 1
      %s326 = scalar_select %p325, %s21, 1
      %p327 = scmp.lt.s32.totalorder %s22, 0
      %s328 = scalar_select %p327, %s22, 0
      %s329 = smul.addr %s326, 4
      %s330 = sadd.s32 %s328, %s329
      %s331 = smul.addr %s330, 4
      %s332 = scalar_lea.vmem %s1, %s331
      %p333 = scmp.lt.s32.totalorder %s21, 1
      %s334 = scalar_select %p333, %s21, 1
      %p335 = scmp.lt.s32.totalorder %s22, 0
      %s336 = scalar_select %p335, %s22, 0
      %s337 = smul.addr %s334, 2
      %s338 = sadd.s32 %s336, %s337
      %s339 = smul.addr %s338, 4
      %s340 = scalar_lea.vmem %s2, %s339
      %p341 = scmp.lt.s32.totalorder %s21, 1
      %s342 = scalar_select %p341, %s21, 1
      %p343 = scmp.lt.s32.totalorder %s22, 0
      %s344 = scalar_select %p343, %s22, 0
      %s345 = smul.addr %s342, 5
      %s346 = sadd.s32 %s344, %s345
      %s347 = smul.addr %s346, 4
      %s348 = scalar_lea.vmem %s3, %s347
      %p349 = scmp.lt.s32.totalorder %s21, 1
      %s350 = scalar_select %p349, %s21, 1
      %p351 = scmp.lt.s32.totalorder %s22, 0
      %s352 = scalar_select %p351, %s22, 0
      %s353 = sadd.s32 %s352, %s350
      %s354 = smul.addr %s353, 4
      %s355 = scalar_lea.vmem %s4, %s354
      %p356 = scmp.lt.s32.totalorder %s21, 1
      %s357 = scalar_select %p356, %s21, 1
      %p358 = scmp.lt.s32.totalorder %s22, 0
      %s359 = scalar_select %p358, %s22, 0
      %s360 = sadd.s32 %s359, %s357
      %s361 = smul.addr %s360, 8
      %s362 = scalar_lea.vmem %s5, %s361
      %v363 = vlaneseq
      %v364 = vshrl.u32 %v363, 7
      %v365 = vlaneseq
      %v366 = vand.u32 %v365, 127
      %s367 = smul.u32 %s22, 512
      %v368 = vmul.u32 %v364, 128
      %v369 = vstv %s367
      %v370 = vadd.s32 %v369, %v368
      %v371 = vadd.s32 %v370, %v366
      %vm372 = vcmp.lt.s32.totalorder %v371, 512
      %v373 = vcvt.s32.f32 %v371
      %v374 = vadd.f32 %v373, 0.5
      %v375 = vmul.f32 %v374, 0.03125
      %v376 = vfloor.f32 %v375
      %v377 = vmul.f32 %v376, 32.0
      %v378 = vsub.f32 %v373, %v377
      %vm379 = vcmp.lt.f32.partialorder %v378, 0.0
      %v380 = vsub.f32 %v376, 1.0
      %v381 = vsel %vm379, %v380, %v376
      %v382 = vadd.f32 %v378, 32.0
      %v383 = vsel %vm379, %v382, %v378
      %vm384 = vcmp.ge.f32.partialorder %v383, 32.0
      %v385 = vadd.f32 %v381, 1.0
      %v386 = vsel %vm384, %v385, %v381
      %v387 = vsub.f32 %v383, 32.0
      %v388 = vsel %vm384, %v387, %v383
      %v389 = vmul.f32 %v388, 21.0
      %v390 = vadd.f32 %v389, 10.5
      %v391 = vmul.f32 %v386, 24.0
      %v392 = vadd.f32 %v391, 12.0
      %v393 = vld [vmem:[%s324] sm:$0xf]
      %v394 = vxor.u32 %v393, 2147483648
      %v395 = vmul.f32 %v394, 1.442695
      %v396 = vpow.pop %v395
      %v397 = vadd.f32 %v396, 1.0
      %v398 = vrcp.pop %v397
      %v399 = vmul.f32 1.0, %v398
      %v400 = vld [vmem:[%s340] sm:$0xf]
      %v401 = vld [vmem:[%s340 + $0x4] sm:$0xf]
      %v402 = vceil.f32 %v400
      %v403 = vceil.f32 %v401
      %v404 = vsel %vm372, %v402, 0.0
      %v405 = vsel %vm372, %v403, 0.0
      %v406 = vld [vmem:[%s348] sm:$0xf]
      %v407 = vld [vmem:[%s348 + $0x4] sm:$0xf]
      %v408 = vld [vmem:[%s348 + $0x8] sm:$0xf]
      %v409 = vld [vmem:[%s348 + $0xc] sm:$0xf]
      %v410 = vld [vmem:[%s348 + $0x10] sm:$0xf]
      %v411 = vsel %vm372, %v410, 0.0
      %v412 = vmul.f32 %v411, %v405
      %v413 = vsub.f32 %v401, %v399
      %v414 = vmul.f32 %v413, %v413
      %v415 = vsel %vm372, %v414, 0.0
      %v416 = vmul.f32 %v415, %v404
      %417 = vst [vmem:[%s355] sm:$0xf] %v416
      %vm418 = vcmask 1043456
      %v419 = vsel %vm418, %v404, 0.0
      %v420 = vrot.slane %v419, 4
      %v421 = vadd.f32 %v419, %v420
      %v422 = vrot.slane %v421, 2
      %v423 = vadd.f32 %v421, %v422
      %v424 = vrot.slane %v423, 1
      %v425 = vadd.f32 %v423, %v424
      %v426 = vsel %vm418, %v405, 0.0
      %v427 = vrot.slane %v426, 4
      %v428 = vadd.f32 %v426, %v427
      %v429 = vrot.slane %v428, 2
      %v430 = vadd.f32 %v428, %v429
      %v431 = vrot.slane %v430, 1
      %v432 = vadd.f32 %v430, %v431
      %v433 = vmul.f32 %v415, %v412
      %v434 = vsel %vm418, %v433, 0.0
      %v435 = vrot.slane %v434, 4
      %v436 = vadd.f32 %v434, %v435
      %v437 = vrot.slane %v436, 2
      %v438 = vadd.f32 %v436, %v437
      %v439 = vrot.slane %v438, 1
      %v440 = vadd.f32 %v438, %v439
      %v441 = vld [vmem:[%s332] sm:$0xf]
      %v442 = vmul.f32 %v441, 80.0
      %v443 = vadd.f32 %v442, %v390
      %s444 = scalar_lea.vmem %s332, 4
      %v445 = vld [vmem:[%s444] sm:$0xf]
      %v446 = vmul.f32 %v445, 80.0
      %v447 = vadd.f32 %v446, %v392
      %s448 = scalar_lea.vmem %s332, 8
      %v449 = vld [vmem:[%s448] sm:$0xf]
      %v450 = vmul.f32 %v449, 80.0
      %v451 = vadd.f32 %v450, %v390
      %s452 = scalar_lea.vmem %s332, 12
      %v453 = vld [vmem:[%s452] sm:$0xf]
      %v454 = vmul.f32 %v453, 80.0
      %v455 = vadd.f32 %v454, %v392
      %v456 = vsub.f32 %v451, %v443
      %v457 = vsub.f32 %v455, %v447
      %v458 = vmul.f32 %v456, 0.5
      %v459 = vadd.f32 %v443, %v458
      %v460 = vmul.f32 %v457, 0.5
      %v461 = vadd.f32 %v447, %v460
      %v462 = vmul.f32 %v408, 0.5
      %v463 = vsub.f32 %v406, %v462
      %v464 = vadd.f32 %v406, %v462
      %v465 = vmul.f32 %v409, 0.5
      %v466 = vsub.f32 %v407, %v465
      %v467 = vadd.f32 %v407, %v465
      %v468 = vmin.f32 %v451, %v464
      %v469 = vmax.f32 %v443, %v463
      %v470 = vsub.f32 %v468, %v469
      %v471 = vmax.f32 %v470, 0.0
      %v472 = vmin.f32 %v455, %v467
      %v473 = vmax.f32 %v447, %v466
      %v474 = vsub.f32 %v472, %v473
      %v475 = vmax.f32 %v474, 0.0
      %v476 = vmul.f32 %v471, %v475
      %v477 = vmul.f32 %v456, %v457
      %v478 = vmul.f32 %v408, %v409
      %v479 = vadd.f32 %v477, %v478
      %v480 = vsub.f32 %v479, %v476
      %v481 = vmax.f32 %v480, 1e-06
      %v482 = vrcp.pop %v481
      %v483 = vmul.f32 %v476, %v482
      %v484 = vsub.f32 %v459, %v406
      %v485 = vmul.f32 %v484, %v484
      %v486 = vsub.f32 %v461, %v407
      %v487 = vmul.f32 %v486, %v486
      %v488 = vadd.f32 %v485, %v487
      %v489 = vmax.f32 %v451, %v464
      %v490 = vmin.f32 %v443, %v463
      %v491 = vsub.f32 %v489, %v490
      %v492 = vmax.f32 %v491, 0.0
      %v493 = vmax.f32 %v455, %v467
      %v494 = vmin.f32 %v447, %v466
      %v495 = vsub.f32 %v493, %v494
      %v496 = vmax.f32 %v495, 0.0
      %v497 = vmul.f32 %v492, %v492
      %v498 = vmul.f32 %v496, %v496
      %v499 = vadd.f32 %v497, %v498
      %v500 = vmax.f32 %v499, 1e-06
      %v501 = vrcp.pop %v500
      %v502 = vmul.f32 %v488, %v501
      %v503 = vsub.f32 %v483, %v502
      %v504 = vmax.f32 %v457, 1e-06
      %v505 = vrcp.pop %v504
      %v506 = vmul.f32 %v456, %v505
      %v507 = vand.u32 2147483647, %v506
      %vm508 = vcmp.gt.f32.partialorder %v507, 1.0
      %v509 = vrcp.pop %v507
      %v510 = vsel %vm508, %v509, %v507
      %v511 = vmul.f32 %v510, %v510
      %v512 = vmul.f32 %v511, 0.002823639
      %v513 = vadd.f32 %v512, -0.015956903
      %v514 = vmul.f32 %v513, %v511
      %v515 = vadd.f32 %v514, 0.04250499
      %v516 = vmul.f32 %v515, %v511
      %v517 = vadd.f32 %v516, -0.07489009
      %v518 = vmul.f32 %v517, %v511
      %v519 = vadd.f32 %v518, 0.10634793
      %v520 = vmul.f32 %v519, %v511
      %v521 = vadd.f32 %v520, -0.14202736
      %v522 = vmul.f32 %v521, %v511
      %v523 = vadd.f32 %v522, 0.19992696
      %v524 = vmul.f32 %v523, %v511
      %v525 = vadd.f32 %v524, -0.33333102
      %v526 = vmul.f32 %v510, %v511
      %v527 = vmul.f32 %v526, %v525
      %v528 = vadd.f32 %v510, %v527
      %v529 = vsub.f32 1.5707964, %v528
      %v530 = vsel %vm508, %v529, %v528
      %vm531 = vcmp.lt.f32.partialorder %v506, 0.0
      %v532 = vsub.f32 0.0, %v530
      %v533 = vsel %vm531, %v532, %v530
      %v534 = vmax.f32 %v409, 1e-06
      %v535 = vrcp.pop %v534
      %v536 = vmul.f32 %v408, %v535
      %v537 = vand.u32 2147483647, %v536
      %vm538 = vcmp.gt.f32.partialorder %v537, 1.0
      %v539 = vrcp.pop %v537
      %v540 = vsel %vm538, %v539, %v537
      %v541 = vmul.f32 %v540, %v540
      %v542 = vmul.f32 %v541, 0.002823639
      %v543 = vadd.f32 %v542, -0.015956903
      %v544 = vmul.f32 %v543, %v541
      %v545 = vadd.f32 %v544, 0.04250499
      %v546 = vmul.f32 %v545, %v541
      %v547 = vadd.f32 %v546, -0.07489009
      %v548 = vmul.f32 %v547, %v541
      %v549 = vadd.f32 %v548, 0.10634793
      %v550 = vmul.f32 %v549, %v541
      %v551 = vadd.f32 %v550, -0.14202736
      %v552 = vmul.f32 %v551, %v541
      %v553 = vadd.f32 %v552, 0.19992696
      %v554 = vmul.f32 %v553, %v541
      %v555 = vadd.f32 %v554, -0.33333102
      %v556 = vmul.f32 %v540, %v541
      %v557 = vmul.f32 %v556, %v555
      %v558 = vadd.f32 %v540, %v557
      %v559 = vsub.f32 1.5707964, %v558
      %v560 = vsel %vm538, %v559, %v558
      %vm561 = vcmp.lt.f32.partialorder %v536, 0.0
      %v562 = vsub.f32 0.0, %v560
      %v563 = vsel %vm561, %v562, %v560
      %v564 = vsub.f32 %v533, %v563
      %v565 = vmul.f32 %v564, %v564
      %v566 = vmul.f32 %v565, 0.40528473
      %v567 = vsub.f32 1.0, %v483
      %v568 = vadd.f32 %v567, %v566
      %v569 = vmax.f32 %v568, 1e-06
      %v570 = vrcp.pop %v569
      %v571 = vmul.f32 %v566, %v570
      %v572 = vmul.f32 %v571, %v566
      %v573 = vsub.f32 %v503, %v572
      %v574 = vsub.f32 1.0, %v573
      %v575 = vmul.f32 %v574, %v412
      %v576 = vsel %vm372, %v575, 0.0
      %v577 = vsel %vm418, %v576, 0.0
      %v578 = vrot.slane %v577, 4
      %v579 = vadd.f32 %v577, %v578
      %v580 = vrot.slane %v579, 2
      %v581 = vadd.f32 %v579, %v580
      %v582 = vrot.slane %v581, 1
      %v583 = vadd.f32 %v581, %v582
      %vm584 = vcmp.eq.s32.totalorder %v364, 0
      %v585 = vsel %vm584, %v425, 0.0
      %vm586 = vcmp.eq.s32.totalorder %v364, 1
      %v587 = vsel %vm586, %v432, 0.0
      %v588 = vadd.f32 %v585, %v587
      %vm589 = vcmp.eq.s32.totalorder %v364, 2
      %v590 = vsel %vm589, %v440, 0.0
      %v591 = vadd.f32 %v588, %v590
      %vm592 = vcmp.eq.s32.totalorder %v364, 3
      %v593 = vsel %vm592, %v583, 0.0
      %v594 = vadd.f32 %v591, %v593
      %595 = vst [vmem:[%s362] sm:$0xff] %v594
      %p596 = scmp.lt.s32.totalorder %s21, 1
      %s597 = scalar_select %p596, %s21, 1
      %p598 = scmp.lt.s32.totalorder %s22, 0
      %s599 = scalar_select %p598, %s22, 0
      %s600 = sadd.s32 %s599, %s597
      %s601 = smul.addr %s600, 4
      %s602 = scalar_lea.vmem %s4, %s601
      %p603 = scmp.lt.s32.totalorder %s21, 1
      %s604 = scalar_select %p603, %s21, 1
      %p605 = scmp.lt.s32.totalorder %s22, 0
      %s606 = scalar_select %p605, %s22, 0
      %s607 = sadd.s32 %s606, %s604
      %s608 = smul.addr %s607, 8
      %s609 = scalar_lea.vmem %s5, %s608
      // Predicated region
      $region37: #{fbod_loss.1} parent=35 // pred_check
        %p610 = pneg %p161
      $region38: #{fbod_loss.1} parent=35 // pred_check_branch
        %612 = sbr.rel (%p610) target = $region40
      $region39: #{fbod_loss.1} parent=35 // pred_region
        _
      $region40: #{fbod_loss.1} parent=35 // pred_fallthru
        _
      // Predicated region
      $region41: #{fbod_loss.1} parent=35 // pred_check
        %p613 = pneg %p189
      $region42: #{fbod_loss.1} parent=35 // pred_check_branch
        %615 = sbr.rel (%p613) target = $region44
      $region43: #{fbod_loss.1} parent=35 // pred_region
        _
      $region44: #{fbod_loss.1} parent=35 // pred_fallthru
        _
    $region36: #{fbod_loss.1} parent=5 // pred_fallthru
      _
    %p616 = scmp.le.s32.totalorder 2, %s12
    // Predicated region
    $region45: #{fbod_loss.1} parent=5 // pred_check
      %p617 = pneg %p616
    $region46: #{fbod_loss.1} parent=5 // pred_check_branch
      %619 = sbr.rel (%p617) target = $region48
    $region47: #{fbod_loss.1} parent=5 // pred_region
      %s620 = ssub.s32 %s12, 2
      // Predicated region
      $region49: #{fbod_loss.1} parent=47 // pred_check
        %p621 = pneg %p167
      $region50: #{fbod_loss.1} parent=47 // pred_check_branch
        %623 = sbr.rel (%p621) target = $region52
      $region51: #{fbod_loss.1} parent=47 // pred_region
        %p624 = scmp.lt.s32.totalorder %s23, 1
        %s625 = scalar_select %p624, %s23, 1
        %p626 = scmp.lt.s32.totalorder %s24, 0
        %s627 = scalar_select %p626, %s24, 0
        %s628 = sadd.s32 %s627, %s625
        %s629 = smul.addr %s628, 4
        %s630 = scalar_lea.vmem %s4, %s629
      $region52: #{fbod_loss.1} parent=47 // pred_fallthru
        _
      // Predicated region
      $region53: #{fbod_loss.1} parent=47 // pred_check
        %p631 = pneg %p195
      $region54: #{fbod_loss.1} parent=47 // pred_check_branch
        %633 = sbr.rel (%p631) target = $region56
      $region55: #{fbod_loss.1} parent=47 // pred_region
        %p634 = scmp.lt.s32.totalorder %s23, 1
        %s635 = scalar_select %p634, %s23, 1
        %p636 = scmp.lt.s32.totalorder %s24, 0
        %s637 = scalar_select %p636, %s24, 0
        %s638 = sadd.s32 %s637, %s635
        %s639 = smul.addr %s638, 8
        %s640 = scalar_lea.vmem %s5, %s639
      $region56: #{fbod_loss.1} parent=47 // pred_fallthru
        _
    $region48: #{fbod_loss.1} parent=5 // pred_fallthru
      _
  $region6: #{fbod_loss.1} parent=0 // loop_footer
    %s16 = sadd.s32 1, %s12
  $region7: #{fbod_loss.1} parent=0 // loop_footer_branch
    %11 = sbr.rel target = $region3
  $region8: #{fbod_loss.1} parent=0 // loop_exit
    _

</llo_original>
